<compile_context>
chip_gen: v7x
topology: tpu7x:2x2x1
jax: 0.10.0
libtpu: 0.0.40
codegen_flags: <defaults>
</compile_context>

<pallas_src>
import jax
import jax.numpy as jnp
from jax import lax
from jax.experimental import pallas as pl
from jax.experimental.pallas import tpu as pltpu


def link_predictor_kernel(xi_ref, xj_ref,
                          w1_ref, b1_ref,
                          w2_ref, b2_ref,
                          w3_ref, b3_ref,
                          out_ref):
    # Hoist bias loads once per tile (JAX does not CSE broadcast_in_dim).
    b1 = b1_ref[...]            # (1, H)
    b2 = b2_ref[...]            # (1, H)
    b3 = b3_ref[...]            # (C_out, 1)

    # Elementwise product of the two endpoint embeddings (VPU).
    x = xi_ref[...] * xj_ref[...]

    # Layer 1: Linear -> ReLU (MXU matmul, f32 accumulate).
    h = jnp.dot(x, w1_ref[...], preferred_element_type=jnp.float32) + b1
    h = jnp.maximum(h, 0.0)
    # TODO(synk): dropout skipped (inference semantics, training=False).

    # Layer 2: Linear -> ReLU.
    h = jnp.dot(h, w2_ref[...], preferred_element_type=jnp.float32) + b2
    h = jnp.maximum(h, 0.0)

    # Output layer computed TRANSPOSED: contract W3's H axis against h's H axis
    # -> (C_out, tile_n), so the batch dim lands on the 128-lane axis and the
    # store is lane-dense (no masked vst with C_out == 1).
    o = lax.dot_general(w3_ref[...], h,
                        dimension_numbers=(((0,), (1,)), ((), ())),
                        preferred_element_type=jnp.float32) + b3
    out_ref[...] = jax.nn.sigmoid(o).astype(out_ref.dtype)


def _round_up(x, m):
    return (x + m - 1) // m * m


def link_predictor(x_i, x_j, params, *, tile_n=2048, use_bf16=False):
    """params: dict with w1/b1, w2/b2, w3/b3; weights stored [in, out]."""
    N, C_in = x_i.shape
    H = params["w1"].shape[1]
    C_out = params["w3"].shape[1]
    out_dtype = x_i.dtype

    assert tile_n % 128 == 0, "tile_n must be a multiple of 128"
    # Clamp tile to the (128-aligned) batch so tiny demos don't over-pad,
    # then pad the batch to a tile multiple (padded rows are sliced off).
    tile = min(tile_n, _round_up(N, 128))
    N_pad = _round_up(N, tile)
    if N_pad != N:
        x_i = jnp.pad(x_i, ((0, N_pad - N), (0, 0)))
        x_j = jnp.pad(x_j, ((0, N_pad - N), (0, 0)))

    if use_bf16:
        # Halves the HBM-bound activation stream on v6e/v7x; f32 accumulate
        # inside the kernel keeps numerics close.
        x_i = x_i.astype(jnp.bfloat16)
        x_j = x_j.astype(jnp.bfloat16)

    # Biases presented 2-D so they broadcast cleanly over the tile.
    b1 = params["b1"].reshape(1, H)
    b2 = params["b2"].reshape(1, H)
    b3 = params["b3"].reshape(C_out, 1)   # matches the transposed final layer

    grid = (N_pad // tile,)

    # Activations tiled over batch; weights/biases replicated to every step.
    act_spec = pl.BlockSpec((tile, C_in), lambda i: (i, 0))
    w1_spec = pl.BlockSpec((C_in, H), lambda i: (0, 0))
    b1_spec = pl.BlockSpec((1, H), lambda i: (0, 0))
    w2_spec = pl.BlockSpec((H, H), lambda i: (0, 0))
    b2_spec = pl.BlockSpec((1, H), lambda i: (0, 0))
    w3_spec = pl.BlockSpec((H, C_out), lambda i: (0, 0))
    b3_spec = pl.BlockSpec((C_out, 1), lambda i: (0, 0))
    # Lane-dense output: (C_out, tile) block, batch on the lane axis.
    out_spec = pl.BlockSpec((C_out, tile), lambda i: (0, i))

    act_bytes = jnp.dtype(x_i.dtype).itemsize
    w_bytes = (C_in * H + H * H + H * C_out + 2 * H + C_out) * 4
    cost = pl.CostEstimate(
        flops=2 * N_pad * (C_in * H + H * H + H * C_out) + N_pad * C_in,
        transcendentals=N_pad * C_out,
        bytes_accessed=2 * N_pad * C_in * act_bytes + N_pad * C_out * 4 + w_bytes,
    )

    out_t = pl.pallas_call(
        link_predictor_kernel,
        out_shape=jax.ShapeDtypeStruct((C_out, N_pad), out_dtype),
        grid_spec=pltpu.PrefetchScalarGridSpec(
            num_scalar_prefetch=0,
            grid=grid,
            in_specs=[act_spec, act_spec,
                      w1_spec, b1_spec,
                      w2_spec, b2_spec,
                      w3_spec, b3_spec],
            out_specs=out_spec,
        ),
        compiler_params=pltpu.CompilerParams(
            dimension_semantics=("parallel",)),
        cost_estimate=cost,
    )(x_i, x_j, params["w1"], b1, params["w2"], b2, params["w3"], b3)

    # Back to the PyTorch layout (N, C_out); drop padded rows.
    return out_t.T[:N]


def init_params(key, in_channels, hidden_channels, out_channels):
    """Deterministic synthetic init (PyTorch-style uniform bounds)."""
    def lin(k, fan_in, fan_out):
        kw, kb = jax.random.split(k)
        bound = 1.0 / jnp.sqrt(fan_in)
        # stored as [in, out] (transposed vs torch's [out, in])
        w = jax.random.uniform(kw, (fan_in, fan_out), jnp.float32, -bound, bound)
        b = jax.random.uniform(kb, (fan_out,), jnp.float32, -bound, bound)
        return w, b

    k1, k2, k3 = jax.random.split(key, 3)
    w1, b1 = lin(k1, in_channels, hidden_channels)
    w2, b2 = lin(k2, hidden_channels, hidden_channels)
    w3, b3 = lin(k3, hidden_channels, out_channels)
    return {"w1": w1, "b1": b1, "w2": w2, "b2": b2, "w3": w3, "b3": b3}


def reference_forward(x_i, x_j, p):
    x = x_i * x_j
    x = jnp.maximum(x @ p["w1"] + p["b1"], 0.0)
    x = jnp.maximum(x @ p["w2"] + p["b2"], 0.0)
    return jax.nn.sigmoid(x @ p["w3"] + p["b3"])


if __name__ == "__main__":
    # num_layers = 3, dropout inactive at inference
    N, C_IN, HID, C_OUT = 256, 32, 32, 1

    key = jax.random.PRNGKey(0)
    kxi, kxj, kp = jax.random.split(key, 3)
    x_i = jax.random.normal(kxi, (N, C_IN), jnp.float32)
    x_j = jax.random.normal(kxj, (N, C_IN), jnp.float32)
    params = init_params(kp, C_IN, HID, C_OUT)

    out = link_predictor(x_i, x_j, params)          # default tile_n=2048, f32
    out = jax.block_until_ready(out)

    ref = reference_forward(x_i, x_j, params)
    assert out.shape == (N, C_OUT)
    assert jnp.allclose(out, ref, atol=1e-5, rtol=1e-5), "mismatch vs reference"

    # Also exercise a non-tile-multiple batch (padding path).
    out_odd = jax.block_until_ready(
        link_predictor(x_i[:200], x_j[:200], params))
    assert out_odd.shape == (200, C_OUT)
    assert jnp.allclose(out_odd, ref[:200], atol=1e-5, rtol=1e-5), "ragged mismatch"

    print("KERNEL_OK")
</pallas_src>

<mosaic_0001>
module attributes {stable_mosaic.version = 11 : i64} {
  func.func @link_predictor_kernel(%arg0: i32, %arg1: memref<256x32xf32, #tpu.memory_space<vmem>>, %arg2: memref<256x32xf32, #tpu.memory_space<vmem>>, %arg3: memref<32x32xf32, #tpu.memory_space<vmem>>, %arg4: memref<1x32xf32, #tpu.memory_space<vmem>>, %arg5: memref<32x32xf32, #tpu.memory_space<vmem>>, %arg6: memref<1x32xf32, #tpu.memory_space<vmem>>, %arg7: memref<32x1xf32, #tpu.memory_space<vmem>>, %arg8: memref<1x1xf32, #tpu.memory_space<vmem>>, %arg9: memref<1x256xf32, #tpu.memory_space<vmem>>) attributes {dimension_semantics = [#tpu.dimension_semantics<parallel>], iteration_bounds = array<i64: 1>, scalar_prefetch = 0 : i64, scratch_operands = 0 : i64, tpu.core_type = #tpu.core_type<tc>, window_params = [{transform_indices = @transform_0, window_bounds = array<i64: 256, 32>}, {transform_indices = @transform_1, window_bounds = array<i64: 256, 32>}, {pipeline_mode = #tpu.pipeline_mode<synchronous>, transform_indices = @transform_2, window_bounds = array<i64: 32, 32>}, {pipeline_mode = #tpu.pipeline_mode<synchronous>, transform_indices = @transform_3, window_bounds = array<i64: 1, 32>}, {pipeline_mode = #tpu.pipeline_mode<synchronous>, transform_indices = @transform_4, window_bounds = array<i64: 32, 32>}, {pipeline_mode = #tpu.pipeline_mode<synchronous>, transform_indices = @transform_5, window_bounds = array<i64: 1, 32>}, {pipeline_mode = #tpu.pipeline_mode<synchronous>, transform_indices = @transform_6, window_bounds = array<i64: 32, 1>}, {pipeline_mode = #tpu.pipeline_mode<synchronous>, transform_indices = @transform_7, window_bounds = array<i64: 1, 1>}, {transform_indices = @transform_8, window_bounds = array<i64: 1, 256>}]} {
    %c0 = arith.constant 0 : index
    %c0_0 = arith.constant 0 : index
    %0 = vector.load %arg4[%c0, %c0_0] : memref<1x32xf32, #tpu.memory_space<vmem>>, vector<1x32xf32>
    %c0_1 = arith.constant 0 : index
    %c0_2 = arith.constant 0 : index
    %1 = vector.load %arg6[%c0_1, %c0_2] : memref<1x32xf32, #tpu.memory_space<vmem>>, vector<1x32xf32>
    %c0_3 = arith.constant 0 : index
    %c0_4 = arith.constant 0 : index
    %2 = vector.load %arg8[%c0_3, %c0_4] : memref<1x1xf32, #tpu.memory_space<vmem>>, vector<1x1xf32>
    %c0_5 = arith.constant 0 : index
    %c0_6 = arith.constant 0 : index
    %3 = vector.load %arg1[%c0_5, %c0_6] : memref<256x32xf32, #tpu.memory_space<vmem>>, vector<256x32xf32>
    %c0_7 = arith.constant 0 : index
    %c0_8 = arith.constant 0 : index
    %4 = vector.load %arg2[%c0_7, %c0_8] : memref<256x32xf32, #tpu.memory_space<vmem>>, vector<256x32xf32>
    %5 = arith.mulf %3, %4 : vector<256x32xf32>
    %c0_9 = arith.constant 0 : index
    %c0_10 = arith.constant 0 : index
    %6 = vector.load %arg3[%c0_9, %c0_10] : memref<32x32xf32, #tpu.memory_space<vmem>>, vector<32x32xf32>
    %cst = arith.constant dense<0.000000e+00> : vector<256x32xf32>
    %7 = tpu.matmul %5, %6, %cst {dimension_numbers = #tpu.dot_dimension_numbers<[1], [0], [0], [1], [0, 0, 1, 1], [], []>} : vector<256x32xf32>, vector<32x32xf32>, vector<256x32xf32> -> vector<256x32xf32>
    %8 = vector.broadcast %0 : vector<1x32xf32> to vector<256x32xf32>
    %9 = arith.addf %7, %8 : vector<256x32xf32>
    %cst_11 = arith.constant 0.000000e+00 : f32
    %10 = vector.broadcast %cst_11 : f32 to vector<256x32xf32>
    %11 = arith.maximumf %9, %10 : vector<256x32xf32>
    %c0_12 = arith.constant 0 : index
    %c0_13 = arith.constant 0 : index
    %12 = vector.load %arg5[%c0_12, %c0_13] : memref<32x32xf32, #tpu.memory_space<vmem>>, vector<32x32xf32>
    %cst_14 = arith.constant dense<0.000000e+00> : vector<256x32xf32>
    %13 = tpu.matmul %11, %12, %cst_14 {dimension_numbers = #tpu.dot_dimension_numbers<[1], [0], [0], [1], [0, 0, 1, 1], [], []>} : vector<256x32xf32>, vector<32x32xf32>, vector<256x32xf32> -> vector<256x32xf32>
    %14 = vector.broadcast %1 : vector<1x32xf32> to vector<256x32xf32>
    %15 = arith.addf %13, %14 : vector<256x32xf32>
    %cst_15 = arith.constant 0.000000e+00 : f32
    %16 = vector.broadcast %cst_15 : f32 to vector<256x32xf32>
    %17 = arith.maximumf %15, %16 : vector<256x32xf32>
    %c0_16 = arith.constant 0 : index
    %c0_17 = arith.constant 0 : index
    %18 = vector.load %arg7[%c0_16, %c0_17] : memref<32x1xf32, #tpu.memory_space<vmem>>, vector<32x1xf32>
    %cst_18 = arith.constant dense<0.000000e+00> : vector<1x256xf32>
    %19 = tpu.matmul %18, %17, %cst_18 {dimension_numbers = #tpu.dot_dimension_numbers<[0], [1], [1], [0], [0, 1, 1, 0], [], []>} : vector<32x1xf32>, vector<256x32xf32>, vector<1x256xf32> -> vector<1x256xf32>
    %20 = vector.broadcast %2 : vector<1x1xf32> to vector<1x256xf32>
    %21 = arith.addf %19, %20 : vector<1x256xf32>
    %22 = arith.negf %21 : vector<1x256xf32>
    %23 = math.exp %22 : vector<1x256xf32>
    %cst_19 = arith.constant 1.000000e+00 : f32
    %24 = vector.broadcast %cst_19 : f32 to vector<1x256xf32>
    %25 = arith.addf %24, %23 : vector<1x256xf32>
    %26 = arith.divf %24, %25 : vector<1x256xf32>
    %c0_20 = arith.constant 0 : index
    %c0_21 = arith.constant 0 : index
    %27 = vector.load %arg9[%c0_20, %c0_21] : memref<1x256xf32, #tpu.memory_space<vmem>>, vector<1x256xf32>
    tpu.vector_store %arg9[%c0_20, %c0_21], %26 {strides = array<i32>} : memref<1x256xf32, #tpu.memory_space<vmem>>, vector<1x256xf32>,
    return
  }
  func.func @transform_0(%arg0: i32) -> (i32, i32) {
    %c0_i32 = arith.constant 0 : i32
    %c0_i32_0 = arith.constant 0 : i32
    return %arg0, %c0_i32 : i32, i32
  }
  func.func @transform_1(%arg0: i32) -> (i32, i32) {
    %c0_i32 = arith.constant 0 : i32
    %c0_i32_0 = arith.constant 0 : i32
    return %arg0, %c0_i32 : i32, i32
  }
  func.func @transform_2(%arg0: i32) -> (i32, i32) {
    %c0_i32 = arith.constant 0 : i32
    %c0_i32_0 = arith.constant 0 : i32
    %c0_i32_1 = arith.constant 0 : i32
    return %c0_i32, %c0_i32_0 : i32, i32
  }
  func.func @transform_3(%arg0: i32) -> (i32, i32) {
    %c0_i32 = arith.constant 0 : i32
    %c0_i32_0 = arith.constant 0 : i32
    %c0_i32_1 = arith.constant 0 : i32
    return %c0_i32, %c0_i32_0 : i32, i32
  }
  func.func @transform_4(%arg0: i32) -> (i32, i32) {
    %c0_i32 = arith.constant 0 : i32
    %c0_i32_0 = arith.constant 0 : i32
    %c0_i32_1 = arith.constant 0 : i32
    return %c0_i32, %c0_i32_0 : i32, i32
  }
  func.func @transform_5(%arg0: i32) -> (i32, i32) {
    %c0_i32 = arith.constant 0 : i32
    %c0_i32_0 = arith.constant 0 : i32
    %c0_i32_1 = arith.constant 0 : i32
    return %c0_i32, %c0_i32_0 : i32, i32
  }
  func.func @transform_6(%arg0: i32) -> (i32, i32) {
    %c0_i32 = arith.constant 0 : i32
    %c0_i32_0 = arith.constant 0 : i32
    %c0_i32_1 = arith.constant 0 : i32
    return %c0_i32, %c0_i32_0 : i32, i32
  }
  func.func @transform_7(%arg0: i32) -> (i32, i32) {
    %c0_i32 = arith.constant 0 : i32
    %c0_i32_0 = arith.constant 0 : i32
    %c0_i32_1 = arith.constant 0 : i32
    return %c0_i32, %c0_i32_0 : i32, i32
  }
  func.func @transform_8(%arg0: i32) -> (i32, i32) {
    %c0_i32 = arith.constant 0 : i32
    %c0_i32_0 = arith.constant 0 : i32
    return %c0_i32, %arg0 : i32, i32
  }
}

</mosaic_0001>

<llo_original>
// kernel: tpu_custom_call.1
$region0: #{tpu_custom_call.1}
  #allocation0 [shape = 'u32[]', space=smem, size = 0x4, offset = 0x4, fixed_abs, tag = 'smem constant byte address 0x4 - core index']
  #allocation1 [shape = 'u32[144,128]{1,0:T(1,128)}', space=vmem, size = 0x12000, scoped, tag = 'internal scratch']
  #allocation2 [shape = 'f32[1,1]{1,0:T(1,128)S(1)}', space=vmem, size = 0x200, scoped, tag = 'scoped memory for tpu_custom_call.1']
  %s0 = inlined_call_operand.vmem [shape: f32[256,32], index: 0, kind: input, shape index: {}]
  %s1 = inlined_call_operand.vmem [shape: f32[256,32], index: 1, kind: input, shape index: {}]
  %s2 = inlined_call_operand.vmem [shape: f32[32,32], index: 2, kind: input, shape index: {}]
  %s3 = inlined_call_operand.vmem [shape: f32[1,32], index: 3, kind: input, shape index: {}]
  %s4 = inlined_call_operand.vmem [shape: f32[32,32], index: 4, kind: input, shape index: {}]
  %s5 = inlined_call_operand.vmem [shape: f32[1,32], index: 5, kind: input, shape index: {}]
  %s6 = inlined_call_operand.vmem [shape: f32[32,1], index: 6, kind: input, shape index: {}]
  %s7 = inlined_call_operand.<no memory space> [shape: f32[1,1], index: 7, kind: input, shape index: {}]
  %s8 = inlined_call_operand.hbm [shape: f32[1,256], index: 8, kind: output, shape index: {}]
  %s9 = sld [smem:[#allocation0]]
  $region42: #{tpu_custom_call.1} parent=0
    _
  %s11 = ssub.s32 1, %s9
  %s12 = scalar_select 0, %s11, %s9
  %v13 = vstv %s7
  %14 = vst [vmem:[#allocation2] sm:$0x1] %v13
  $region1: #{tpu_custom_call.1} parent=0
    #allocation3 [shape = 'u8[1024]{0}', space=vmem, size = 0x400, scoped, tag = 'output window, operand 0, single buffered']
    #allocation4 [shape = 's32[1]{0}', space=sflag, size = 0x4, scoped, tag = 'scoped memory for tpu_custom_call.1']
    %15 = vsyncpa [#allocation4], 0
    // Predicated region
    $region2: #{tpu_custom_call.1} parent=1 // pred_check
      _
    $region3: #{tpu_custom_call.1} parent=1 // pred_check_branch
      %17 = sbr.rel (0) target = $region5
    $region4: #{tpu_custom_call.1} parent=1 // pred_region
      _
    $region5: #{tpu_custom_call.1} parent=1 // pred_fallthru
      _
    // Predicated region
    $region6: #{tpu_custom_call.1} parent=1 // pred_check
      _
    $region7: #{tpu_custom_call.1} parent=1 // pred_check_branch
      %19 = sbr.rel (0) target = $region9
    $region8: #{tpu_custom_call.1} parent=1 // pred_region
      _
    $region9: #{tpu_custom_call.1} parent=1 // pred_fallthru
      _
    // Predicated region
    $region10: #{tpu_custom_call.1} parent=1 // pred_check
      _
    $region11: #{tpu_custom_call.1} parent=1 // pred_check_branch
      %21 = sbr.rel (0) target = $region13
    $region12: #{tpu_custom_call.1} parent=1 // pred_region
      _
    $region13: #{tpu_custom_call.1} parent=1 // pred_fallthru
      _
    // Predicated region
    $region14: #{tpu_custom_call.1} parent=1 // pred_check
      _
    $region15: #{tpu_custom_call.1} parent=1 // pred_check_branch
      %23 = sbr.rel (0) target = $region17
    $region16: #{tpu_custom_call.1} parent=1 // pred_region
      _
    $region17: #{tpu_custom_call.1} parent=1 // pred_fallthru
      _
    // Predicated region
    $region18: #{tpu_custom_call.1} parent=1 // pred_check
      _
    $region19: #{tpu_custom_call.1} parent=1 // pred_check_branch
      %25 = sbr.rel (0) target = $region21
    $region20: #{tpu_custom_call.1} parent=1 // pred_region
      _
    $region21: #{tpu_custom_call.1} parent=1 // pred_fallthru
      _
    // Predicated region
    $region22: #{tpu_custom_call.1} parent=1 // pred_check
      _
    $region23: #{tpu_custom_call.1} parent=1 // pred_check_branch
      %27 = sbr.rel (0) target = $region25
    $region24: #{tpu_custom_call.1} parent=1 // pred_region
      _
    $region25: #{tpu_custom_call.1} parent=1 // pred_fallthru
      _
    // Predicated region
    $region26: #{tpu_custom_call.1} parent=1 // pred_check
      _
    $region27: #{tpu_custom_call.1} parent=1 // pred_check_branch
      %29 = sbr.rel (0) target = $region29
    $region28: #{tpu_custom_call.1} parent=1 // pred_region
      _
    $region29: #{tpu_custom_call.1} parent=1 // pred_fallthru
      _
    // Predicated region
    $region30: #{tpu_custom_call.1} parent=1 // pred_check
      _
    $region31: #{tpu_custom_call.1} parent=1 // pred_check_branch
      %31 = sbr.rel (0) target = $region33
    $region32: #{tpu_custom_call.1} parent=1 // pred_region
      _
    $region33: #{tpu_custom_call.1} parent=1 // pred_fallthru
      _
    %v32 = vld [vmem:[%s3] sm:$0x1]
    %v33 = vld [vmem:[%s5] sm:$0x1]
    %v34 = vld [vmem:[#allocation2] sm:$0x1]
    %v35 = vld [vmem:[%s0] sm:$0xff]
    %v36 = vld [vmem:[%s0 + $0x8] sm:$0xff]
    %v37 = vld [vmem:[%s0 + $0x10] sm:$0xff]
    %v38 = vld [vmem:[%s0 + $0x18] sm:$0xff]
    %v39 = vld [vmem:[%s0 + $0x20] sm:$0xff]
    %v40 = vld [vmem:[%s0 + $0x28] sm:$0xff]
    %v41 = vld [vmem:[%s0 + $0x30] sm:$0xff]
    %v42 = vld [vmem:[%s0 + $0x38] sm:$0xff]
    %v43 = vld [vmem:[%s0 + $0x40] sm:$0xff]
    %v44 = vld [vmem:[%s0 + $0x48] sm:$0xff]
    %v45 = vld [vmem:[%s0 + $0x50] sm:$0xff]
    %v46 = vld [vmem:[%s0 + $0x58] sm:$0xff]
    %v47 = vld [vmem:[%s0 + $0x60] sm:$0xff]
    %v48 = vld [vmem:[%s0 + $0x68] sm:$0xff]
    %v49 = vld [vmem:[%s0 + $0x70] sm:$0xff]
    %v50 = vld [vmem:[%s0 + $0x78] sm:$0xff]
    %v51 = vld [vmem:[%s0 + $0x80] sm:$0xff]
    %v52 = vld [vmem:[%s0 + $0x88] sm:$0xff]
    %v53 = vld [vmem:[%s0 + $0x90] sm:$0xff]
    %v54 = vld [vmem:[%s0 + $0x98] sm:$0xff]
    %v55 = vld [vmem:[%s0 + $0xa0] sm:$0xff]
    %v56 = vld [vmem:[%s0 + $0xa8] sm:$0xff]
    %v57 = vld [vmem:[%s0 + $0xb0] sm:$0xff]
    %v58 = vld [vmem:[%s0 + $0xb8] sm:$0xff]
    %v59 = vld [vmem:[%s0 + $0xc0] sm:$0xff]
    %v60 = vld [vmem:[%s0 + $0xc8] sm:$0xff]
    %v61 = vld [vmem:[%s0 + $0xd0] sm:$0xff]
    %v62 = vld [vmem:[%s0 + $0xd8] sm:$0xff]
    %v63 = vld [vmem:[%s0 + $0xe0] sm:$0xff]
    %v64 = vld [vmem:[%s0 + $0xe8] sm:$0xff]
    %v65 = vld [vmem:[%s0 + $0xf0] sm:$0xff]
    %v66 = vld [vmem:[%s0 + $0xf8] sm:$0xff]
    %v67 = vld [vmem:[%s1] sm:$0xff]
    %v68 = vld [vmem:[%s1 + $0x8] sm:$0xff]
    %v69 = vld [vmem:[%s1 + $0x10] sm:$0xff]
    %v70 = vld [vmem:[%s1 + $0x18] sm:$0xff]
    %v71 = vld [vmem:[%s1 + $0x20] sm:$0xff]
    %v72 = vld [vmem:[%s1 + $0x28] sm:$0xff]
    %v73 = vld [vmem:[%s1 + $0x30] sm:$0xff]
    %v74 = vld [vmem:[%s1 + $0x38] sm:$0xff]
    %v75 = vld [vmem:[%s1 + $0x40] sm:$0xff]
    %v76 = vld [vmem:[%s1 + $0x48] sm:$0xff]
    %v77 = vld [vmem:[%s1 + $0x50] sm:$0xff]
    %v78 = vld [vmem:[%s1 + $0x58] sm:$0xff]
    %v79 = vld [vmem:[%s1 + $0x60] sm:$0xff]
    %v80 = vld [vmem:[%s1 + $0x68] sm:$0xff]
    %v81 = vld [vmem:[%s1 + $0x70] sm:$0xff]
    %v82 = vld [vmem:[%s1 + $0x78] sm:$0xff]
    %v83 = vld [vmem:[%s1 + $0x80] sm:$0xff]
    %v84 = vld [vmem:[%s1 + $0x88] sm:$0xff]
    %v85 = vld [vmem:[%s1 + $0x90] sm:$0xff]
    %v86 = vld [vmem:[%s1 + $0x98] sm:$0xff]
    %v87 = vld [vmem:[%s1 + $0xa0] sm:$0xff]
    %v88 = vld [vmem:[%s1 + $0xa8] sm:$0xff]
    %v89 = vld [vmem:[%s1 + $0xb0] sm:$0xff]
    %v90 = vld [vmem:[%s1 + $0xb8] sm:$0xff]
    %v91 = vld [vmem:[%s1 + $0xc0] sm:$0xff]
    %v92 = vld [vmem:[%s1 + $0xc8] sm:$0xff]
    %v93 = vld [vmem:[%s1 + $0xd0] sm:$0xff]
    %v94 = vld [vmem:[%s1 + $0xd8] sm:$0xff]
    %v95 = vld [vmem:[%s1 + $0xe0] sm:$0xff]
    %v96 = vld [vmem:[%s1 + $0xe8] sm:$0xff]
    %v97 = vld [vmem:[%s1 + $0xf0] sm:$0xff]
    %v98 = vld [vmem:[%s1 + $0xf8] sm:$0xff]
    %v99 = vmul.f32 %v35, %v67
    %v100 = vmul.f32 %v36, %v68
    %v101 = vmul.f32 %v37, %v69
    %v102 = vmul.f32 %v38, %v70
    %v103 = vmul.f32 %v39, %v71
    %v104 = vmul.f32 %v40, %v72
    %v105 = vmul.f32 %v41, %v73
    %v106 = vmul.f32 %v42, %v74
    %v107 = vmul.f32 %v43, %v75
    %v108 = vmul.f32 %v44, %v76
    %v109 = vmul.f32 %v45, %v77
    %v110 = vmul.f32 %v46, %v78
    %v111 = vmul.f32 %v47, %v79
    %v112 = vmul.f32 %v48, %v80
    %v113 = vmul.f32 %v49, %v81
    %v114 = vmul.f32 %v50, %v82
    %v115 = vmul.f32 %v51, %v83
    %v116 = vmul.f32 %v52, %v84
    %v117 = vmul.f32 %v53, %v85
    %v118 = vmul.f32 %v54, %v86
    %v119 = vmul.f32 %v55, %v87
    %v120 = vmul.f32 %v56, %v88
    %v121 = vmul.f32 %v57, %v89
    %v122 = vmul.f32 %v58, %v90
    %v123 = vmul.f32 %v59, %v91
    %v124 = vmul.f32 %v60, %v92
    %v125 = vmul.f32 %v61, %v93
    %v126 = vmul.f32 %v62, %v94
    %v127 = vmul.f32 %v63, %v95
    %v128 = vmul.f32 %v64, %v96
    %v129 = vmul.f32 %v65, %v97
    %v130 = vmul.f32 %v66, %v98
    %v131 = vld [vmem:[%s2] sm:$0xff]
    %v132 = vld [vmem:[%s2 + $0x8] sm:$0xff]
    %v133 = vld [vmem:[%s2 + $0x10] sm:$0xff]
    %v134 = vld [vmem:[%s2 + $0x18] sm:$0xff]
    %v136 = vlaneseq
    %v137 = vshrl.u32 %v136, 7
    %v138 = vsub.s32 0, %v137
    %v139 = vrot.slane %v32, %v138
    %vm141 = vcmask 261120
    %v143 = vsel %vm141, %v99, 0
    %v146 = vsel %vm141, %v100, 0
    %v149 = vsel %vm141, %v101, 0
    %v152 = vsel %vm141, %v102, 0
    %v155 = vsel %vm141, %v103, 0
    %v158 = vsel %vm141, %v104, 0
    %v161 = vsel %vm141, %v105, 0
    %v164 = vsel %vm141, %v106, 0
    %v167 = vsel %vm141, %v107, 0
    %v170 = vsel %vm141, %v108, 0
    %v173 = vsel %vm141, %v109, 0
    %v176 = vsel %vm141, %v110, 0
    %v179 = vsel %vm141, %v111, 0
    %v182 = vsel %vm141, %v112, 0
    %v185 = vsel %vm141, %v113, 0
    %v188 = vsel %vm141, %v114, 0
    %v191 = vsel %vm141, %v115, 0
    %v194 = vsel %vm141, %v116, 0
    %v197 = vsel %vm141, %v117, 0
    %v200 = vsel %vm141, %v118, 0
    %v203 = vsel %vm141, %v119, 0
    %v206 = vsel %vm141, %v120, 0
    %v209 = vsel %vm141, %v121, 0
    %v212 = vsel %vm141, %v122, 0
    %v215 = vsel %vm141, %v123, 0
    %v218 = vsel %vm141, %v124, 0
    %v221 = vsel %vm141, %v125, 0
    %v224 = vsel %vm141, %v126, 0
    %v227 = vsel %vm141, %v127, 0
    %v230 = vsel %vm141, %v128, 0
    %v233 = vsel %vm141, %v129, 0
    %v236 = vsel %vm141, %v130, 0
    %238 = vmatprep.subr.mxu0 0.0
    %239 = vmatpush1.msra.mxu0 %v131
    %240 = vmatprep.subr.mxu0 0.0
    %241 = vmatpush1.msra.mxu0 %v132
    %242 = vmatprep.subr.mxu0 0.0
    %243 = vmatpush1.msra.mxu0 %v133
    %244 = vmatprep.subr.mxu0 0.0
    %245 = vmatpush1.msra.mxu0 %v134
    %246 = vmatprep.subr.mxu0 0.0
    %247 = vmatpush1.msra.mxu0 0.0
    %248 = vmatprep.subr.mxu0 0.0
    %249 = vmatpush1.msra.mxu0 0.0
    %250 = vmatprep.subr.mxu0 0.0
    %251 = vmatpush1.msra.mxu0 0.0
    %252 = vmatprep.subr.mxu0 0.0
    %253 = vmatpush1.msra.mxu0 0.0
    %254 = vmatprep.subr.mxu0 0.0
    %255 = vmatpush1.msra.mxu0 0.0
    %256 = vmatprep.subr.mxu0 0.0
    %257 = vmatpush1.msra.mxu0 0.0
    %258 = vmatprep.subr.mxu0 0.0
    %259 = vmatpush1.msra.mxu0 0.0
    %260 = vmatprep.subr.mxu0 0.0
    %261 = vmatpush1.msra.mxu0 0.0
    %262 = vmatprep.subr.mxu0 0.0
    %263 = vmatpush1.msra.mxu0 0.0
    %264 = vmatprep.subr.mxu0 0.0
    %265 = vmatpush1.msra.mxu0 0.0
    %266 = vmatprep.subr.mxu0 0.0
    %267 = vmatpush1.msra.mxu0 0.0
    %268 = vmatprep.subr.mxu0 0.0
    %269 = vmatpush1.msra.mxu0 0.0
    %270 = vmatprep.subr.mxu0 0.0
    %271 = vmatpush1.msra.mxu0 0.0
    %272 = vmatprep.subr.mxu0 0.0
    %273 = vmatpush1.msra.mxu0 0.0
    %274 = vmatprep.subr.mxu0 0.0
    %275 = vmatpush1.msra.mxu0 0.0
    %276 = vmatprep.subr.mxu0 0.0
    %277 = vmatpush1.msra.mxu0 0.0
    %278 = vmatprep.subr.mxu0 0.0
    %279 = vmatpush1.msra.mxu0 0.0
    %280 = vmatprep.subr.mxu0 0.0
    %281 = vmatpush1.msra.mxu0 0.0
    %282 = vmatprep.subr.mxu0 0.0
    %283 = vmatpush1.msra.mxu0 0.0
    %284 = vmatprep.subr.mxu0 0.0
    %285 = vmatpush1.msra.mxu0 0.0
    %286 = vmatprep.subr.mxu0 0.0
    %287 = vmatpush1.msra.mxu0 0.0
    %288 = vmatprep.subr.mxu0 0.0
    %289 = vmatpush1.msra.mxu0 0.0
    %290 = vmatprep.subr.mxu0 0.0
    %291 = vmatpush1.msra.mxu0 0.0
    %292 = vmatprep.subr.mxu0 0.0
    %293 = vmatpush1.msra.mxu0 0.0
    %294 = vmatprep.subr.mxu0 0.0
    %295 = vmatpush1.msra.mxu0 0.0
    %296 = vmatprep.subr.mxu0 0.0
    %297 = vmatpush1.msra.mxu0 0.0
    %298 = vmatprep.subr.mxu0 0.0
    %299 = vmatpush1.msra.mxu0 0.0
    %300 = vmatprep.subr.mxu0 0.0
    %301 = vmatpush1.msra.mxu0 0.0
    %302 = vmatprep.mubr.f32.mxu0 0.0
    %303 = vmatmul.mubr.f32.gmra.mrb[0].mxu0 %v143
    %v304 = vpop.f32.mrb[0].mxu0
    %v305 = vadd.f32 %v139, %v304
    %v306 = vpop.f32.mrb[0].mxu0
    %307 = vmatprep.mubr.f32.mxu0 0.0
    %308 = vmatmul.mubr.f32.gmra.mrb[0].mxu0 %v146
    %v309 = vpop.f32.mrb[0].mxu0
    %v310 = vadd.f32 %v139, %v309
    %v311 = vpop.f32.mrb[0].mxu0
    %312 = vmatprep.mubr.f32.mxu0 0.0
    %313 = vmatmul.mubr.f32.gmra.mrb[0].mxu0 %v149
    %v314 = vpop.f32.mrb[0].mxu0
    %v315 = vadd.f32 %v139, %v314
    %v316 = vpop.f32.mrb[0].mxu0
    %317 = vmatprep.mubr.f32.mxu0 0.0
    %318 = vmatmul.mubr.f32.gmra.mrb[0].mxu0 %v152
    %v319 = vpop.f32.mrb[0].mxu0
    %v320 = vadd.f32 %v139, %v319
    %v321 = vpop.f32.mrb[0].mxu0
    %322 = vmatprep.mubr.f32.mxu0 0.0
    %323 = vmatmul.mubr.f32.gmra.mrb[0].mxu0 %v155
    %v324 = vpop.f32.mrb[0].mxu0
    %v325 = vadd.f32 %v139, %v324
    %v326 = vpop.f32.mrb[0].mxu0
    %327 = vmatprep.mubr.f32.mxu0 0.0
    %328 = vmatmul.mubr.f32.gmra.mrb[0].mxu0 %v158
    %v329 = vpop.f32.mrb[0].mxu0
    %v330 = vadd.f32 %v139, %v329
    %v331 = vpop.f32.mrb[0].mxu0
    %332 = vmatprep.mubr.f32.mxu0 0.0
    %333 = vmatmul.mubr.f32.gmra.mrb[0].mxu0 %v161
    %v334 = vpop.f32.mrb[0].mxu0
    %v335 = vadd.f32 %v139, %v334
    %v336 = vpop.f32.mrb[0].mxu0
    %337 = vmatprep.mubr.f32.mxu0 0.0
    %338 = vmatmul.mubr.f32.gmra.mrb[0].mxu0 %v164
    %v339 = vpop.f32.mrb[0].mxu0
    %v340 = vadd.f32 %v139, %v339
    %v341 = vpop.f32.mrb[0].mxu0
    %342 = vmatprep.mubr.f32.mxu0 0.0
    %343 = vmatmul.mubr.f32.gmra.mrb[0].mxu0 %v167
    %v344 = vpop.f32.mrb[0].mxu0
    %v345 = vadd.f32 %v139, %v344
    %v346 = vpop.f32.mrb[0].mxu0
    %347 = vmatprep.mubr.f32.mxu0 0.0
    %348 = vmatmul.mubr.f32.gmra.mrb[0].mxu0 %v170
    %v349 = vpop.f32.mrb[0].mxu0
    %v350 = vadd.f32 %v139, %v349
    %v351 = vpop.f32.mrb[0].mxu0
    %352 = vmatprep.mubr.f32.mxu0 0.0
    %353 = vmatmul.mubr.f32.gmra.mrb[0].mxu0 %v173
    %v354 = vpop.f32.mrb[0].mxu0
    %v355 = vadd.f32 %v139, %v354
    %v356 = vpop.f32.mrb[0].mxu0
    %357 = vmatprep.mubr.f32.mxu0 0.0
    %358 = vmatmul.mubr.f32.gmra.mrb[0].mxu0 %v176
    %v359 = vpop.f32.mrb[0].mxu0
    %v360 = vadd.f32 %v139, %v359
    %v361 = vpop.f32.mrb[0].mxu0
    %362 = vmatprep.mubr.f32.mxu0 0.0
    %363 = vmatmul.mubr.f32.gmra.mrb[0].mxu0 %v179
    %v364 = vpop.f32.mrb[0].mxu0
    %v365 = vadd.f32 %v139, %v364
    %v366 = vpop.f32.mrb[0].mxu0
    %367 = vmatprep.mubr.f32.mxu0 0.0
    %368 = vmatmul.mubr.f32.gmra.mrb[0].mxu0 %v182
    %v369 = vpop.f32.mrb[0].mxu0
    %v370 = vadd.f32 %v139, %v369
    %v371 = vpop.f32.mrb[0].mxu0
    %372 = vmatprep.mubr.f32.mxu0 0.0
    %373 = vmatmul.mubr.f32.gmra.mrb[0].mxu0 %v185
    %v374 = vpop.f32.mrb[0].mxu0
    %v375 = vadd.f32 %v139, %v374
    %v376 = vpop.f32.mrb[0].mxu0
    %377 = vmatprep.mubr.f32.mxu0 0.0
    %378 = vmatmul.mubr.f32.gmra.mrb[0].mxu0 %v188
    %v379 = vpop.f32.mrb[0].mxu0
    %v380 = vadd.f32 %v139, %v379
    %v381 = vpop.f32.mrb[0].mxu0
    %382 = vmatprep.mubr.f32.mxu0 0.0
    %383 = vmatmul.mubr.f32.gmra.mrb[0].mxu0 %v191
    %v384 = vpop.f32.mrb[0].mxu0
    %v385 = vadd.f32 %v139, %v384
    %v386 = vpop.f32.mrb[0].mxu0
    %387 = vmatprep.mubr.f32.mxu0 0.0
    %388 = vmatmul.mubr.f32.gmra.mrb[0].mxu0 %v194
    %v389 = vpop.f32.mrb[0].mxu0
    %v390 = vadd.f32 %v139, %v389
    %v391 = vpop.f32.mrb[0].mxu0
    %392 = vmatprep.mubr.f32.mxu0 0.0
    %393 = vmatmul.mubr.f32.gmra.mrb[0].mxu0 %v197
    %v394 = vpop.f32.mrb[0].mxu0
    %v395 = vadd.f32 %v139, %v394
    %v396 = vpop.f32.mrb[0].mxu0
    %397 = vmatprep.mubr.f32.mxu0 0.0
    %398 = vmatmul.mubr.f32.gmra.mrb[0].mxu0 %v200
    %v399 = vpop.f32.mrb[0].mxu0
    %v400 = vadd.f32 %v139, %v399
    %v401 = vpop.f32.mrb[0].mxu0
    %402 = vmatprep.mubr.f32.mxu0 0.0
    %403 = vmatmul.mubr.f32.gmra.mrb[0].mxu0 %v203
    %v404 = vpop.f32.mrb[0].mxu0
    %v405 = vadd.f32 %v139, %v404
    %v406 = vpop.f32.mrb[0].mxu0
    %407 = vmatprep.mubr.f32.mxu0 0.0
    %408 = vmatmul.mubr.f32.gmra.mrb[0].mxu0 %v206
    %v409 = vpop.f32.mrb[0].mxu0
    %v410 = vadd.f32 %v139, %v409
    %v411 = vpop.f32.mrb[0].mxu0
    %412 = vmatprep.mubr.f32.mxu0 0.0
    %413 = vmatmul.mubr.f32.gmra.mrb[0].mxu0 %v209
    %v414 = vpop.f32.mrb[0].mxu0
    %v415 = vadd.f32 %v139, %v414
    %v416 = vpop.f32.mrb[0].mxu0
    %417 = vmatprep.mubr.f32.mxu0 0.0
    %418 = vmatmul.mubr.f32.gmra.mrb[0].mxu0 %v212
    %v419 = vpop.f32.mrb[0].mxu0
    %v420 = vadd.f32 %v139, %v419
    %v421 = vpop.f32.mrb[0].mxu0
    %422 = vmatprep.mubr.f32.mxu0 0.0
    %423 = vmatmul.mubr.f32.gmra.mrb[0].mxu0 %v215
    %v424 = vpop.f32.mrb[0].mxu0
    %v425 = vadd.f32 %v139, %v424
    %v426 = vpop.f32.mrb[0].mxu0
    %427 = vmatprep.mubr.f32.mxu0 0.0
    %428 = vmatmul.mubr.f32.gmra.mrb[0].mxu0 %v218
    %v429 = vpop.f32.mrb[0].mxu0
    %v430 = vadd.f32 %v139, %v429
    %v431 = vpop.f32.mrb[0].mxu0
    %432 = vmatprep.mubr.f32.mxu0 0.0
    %433 = vmatmul.mubr.f32.gmra.mrb[0].mxu0 %v221
    %v434 = vpop.f32.mrb[0].mxu0
    %v435 = vadd.f32 %v139, %v434
    %v436 = vpop.f32.mrb[0].mxu0
    %437 = vmatprep.mubr.f32.mxu0 0.0
    %438 = vmatmul.mubr.f32.gmra.mrb[0].mxu0 %v224
    %v439 = vpop.f32.mrb[0].mxu0
    %v440 = vadd.f32 %v139, %v439
    %v441 = vpop.f32.mrb[0].mxu0
    %442 = vmatprep.mubr.f32.mxu0 0.0
    %443 = vmatmul.mubr.f32.gmra.mrb[0].mxu0 %v227
    %v444 = vpop.f32.mrb[0].mxu0
    %v445 = vadd.f32 %v139, %v444
    %v446 = vpop.f32.mrb[0].mxu0
    %447 = vmatprep.mubr.f32.mxu0 0.0
    %448 = vmatmul.mubr.f32.gmra.mrb[0].mxu0 %v230
    %v449 = vpop.f32.mrb[0].mxu0
    %v450 = vadd.f32 %v139, %v449
    %v451 = vpop.f32.mrb[0].mxu0
    %452 = vmatprep.mubr.f32.mxu0 0.0
    %453 = vmatmul.mubr.f32.gmra.mrb[0].mxu0 %v233
    %v454 = vpop.f32.mrb[0].mxu0
    %v455 = vadd.f32 %v139, %v454
    %v456 = vpop.f32.mrb[0].mxu0
    %457 = vmatprep.mubr.f32.mxu0 0.0
    %458 = vmatmul.mubr.f32.gmra.mrb[0].mxu0 %v236
    %v459 = vpop.f32.mrb[0].mxu0
    %v460 = vadd.f32 %v139, %v459
    %v461 = vpop.f32.mrb[0].mxu0
    %462 = vdwg.mxu0
    %v463 = vmax.f32 %v305, 0.0
    %v464 = vmax.f32 %v310, 0.0
    %v465 = vmax.f32 %v315, 0.0
    %v466 = vmax.f32 %v320, 0.0
    %v467 = vmax.f32 %v325, 0.0
    %v468 = vmax.f32 %v330, 0.0
    %v469 = vmax.f32 %v335, 0.0
    %v470 = vmax.f32 %v340, 0.0
    %v471 = vmax.f32 %v345, 0.0
    %v472 = vmax.f32 %v350, 0.0
    %v473 = vmax.f32 %v355, 0.0
    %v474 = vmax.f32 %v360, 0.0
    %v475 = vmax.f32 %v365, 0.0
    %v476 = vmax.f32 %v370, 0.0
    %v477 = vmax.f32 %v375, 0.0
    %v478 = vmax.f32 %v380, 0.0
    %v479 = vmax.f32 %v385, 0.0
    %v480 = vmax.f32 %v390, 0.0
    %v481 = vmax.f32 %v395, 0.0
    %v482 = vmax.f32 %v400, 0.0
    %v483 = vmax.f32 %v405, 0.0
    %v484 = vmax.f32 %v410, 0.0
    %v485 = vmax.f32 %v415, 0.0
    %v486 = vmax.f32 %v420, 0.0
    %v487 = vmax.f32 %v425, 0.0
    %v488 = vmax.f32 %v430, 0.0
    %v489 = vmax.f32 %v435, 0.0
    %v490 = vmax.f32 %v440, 0.0
    %v491 = vmax.f32 %v445, 0.0
    %v492 = vmax.f32 %v450, 0.0
    %v493 = vmax.f32 %v455, 0.0
    %v494 = vmax.f32 %v460, 0.0
    %v495 = vld [vmem:[%s4] sm:$0xff]
    %v496 = vld [vmem:[%s4 + $0x8] sm:$0xff]
    %v497 = vld [vmem:[%s4 + $0x10] sm:$0xff]
    %v498 = vld [vmem:[%s4 + $0x18] sm:$0xff]
    %v500 = vlaneseq
    %v501 = vshrl.u32 %v500, 7
    %v502 = vsub.s32 0, %v501
    %v503 = vrot.slane %v33, %v502
    %v506 = vsel %vm141, %v463, 0
    %v509 = vsel %vm141, %v464, 0
    %v512 = vsel %vm141, %v465, 0
    %v515 = vsel %vm141, %v466, 0
    %v518 = vsel %vm141, %v467, 0
    %v521 = vsel %vm141, %v468, 0
    %v524 = vsel %vm141, %v469, 0
    %v527 = vsel %vm141, %v470, 0
    %v530 = vsel %vm141, %v471, 0
    %v533 = vsel %vm141, %v472, 0
    %v536 = vsel %vm141, %v473, 0
    %v539 = vsel %vm141, %v474, 0
    %v542 = vsel %vm141, %v475, 0
    %v545 = vsel %vm141, %v476, 0
    %v548 = vsel %vm141, %v477, 0
    %v551 = vsel %vm141, %v478, 0
    %v554 = vsel %vm141, %v479, 0
    %v557 = vsel %vm141, %v480, 0
    %v560 = vsel %vm141, %v481, 0
    %v563 = vsel %vm141, %v482, 0
    %v566 = vsel %vm141, %v483, 0
    %v569 = vsel %vm141, %v484, 0
    %v572 = vsel %vm141, %v485, 0
    %v575 = vsel %vm141, %v486, 0
    %v578 = vsel %vm141, %v487, 0
    %v581 = vsel %vm141, %v488, 0
    %v584 = vsel %vm141, %v489, 0
    %v587 = vsel %vm141, %v490, 0
    %v590 = vsel %vm141, %v491, 0
    %v593 = vsel %vm141, %v492, 0
    %v596 = vsel %vm141, %v493, 0
    %v599 = vsel %vm141, %v494, 0
    %601 = vmatprep.subr.mxu0 0.0
    %602 = vmatpush1.msra.mxu0 %v495
    %603 = vmatprep.subr.mxu0 0.0
    %604 = vmatpush1.msra.mxu0 %v496
    %605 = vmatprep.subr.mxu0 0.0
    %606 = vmatpush1.msra.mxu0 %v497
    %607 = vmatprep.subr.mxu0 0.0
    %608 = vmatpush1.msra.mxu0 %v498
    %609 = vmatprep.subr.mxu0 0.0
    %610 = vmatpush1.msra.mxu0 0.0
    %611 = vmatprep.subr.mxu0 0.0
    %612 = vmatpush1.msra.mxu0 0.0
    %613 = vmatprep.subr.mxu0 0.0
    %614 = vmatpush1.msra.mxu0 0.0
    %615 = vmatprep.subr.mxu0 0.0
    %616 = vmatpush1.msra.mxu0 0.0
    %617 = vmatprep.subr.mxu0 0.0
    %618 = vmatpush1.msra.mxu0 0.0
    %619 = vmatprep.subr.mxu0 0.0
    %620 = vmatpush1.msra.mxu0 0.0
    %621 = vmatprep.subr.mxu0 0.0
    %622 = vmatpush1.msra.mxu0 0.0
    %623 = vmatprep.subr.mxu0 0.0
    %624 = vmatpush1.msra.mxu0 0.0
    %625 = vmatprep.subr.mxu0 0.0
    %626 = vmatpush1.msra.mxu0 0.0
    %627 = vmatprep.subr.mxu0 0.0
    %628 = vmatpush1.msra.mxu0 0.0
    %629 = vmatprep.subr.mxu0 0.0
    %630 = vmatpush1.msra.mxu0 0.0
    %631 = vmatprep.subr.mxu0 0.0
    %632 = vmatpush1.msra.mxu0 0.0
    %633 = vmatprep.subr.mxu0 0.0
    %634 = vmatpush1.msra.mxu0 0.0
    %635 = vmatprep.subr.mxu0 0.0
    %636 = vmatpush1.msra.mxu0 0.0
    %637 = vmatprep.subr.mxu0 0.0
    %638 = vmatpush1.msra.mxu0 0.0
    %639 = vmatprep.subr.mxu0 0.0
    %640 = vmatpush1.msra.mxu0 0.0
    %641 = vmatprep.subr.mxu0 0.0
    %642 = vmatpush1.msra.mxu0 0.0
    %643 = vmatprep.subr.mxu0 0.0
    %644 = vmatpush1.msra.mxu0 0.0
    %645 = vmatprep.subr.mxu0 0.0
    %646 = vmatpush1.msra.mxu0 0.0
    %647 = vmatprep.subr.mxu0 0.0
    %648 = vmatpush1.msra.mxu0 0.0
    %649 = vmatprep.subr.mxu0 0.0
    %650 = vmatpush1.msra.mxu0 0.0
    %651 = vmatprep.subr.mxu0 0.0
    %652 = vmatpush1.msra.mxu0 0.0
    %653 = vmatprep.subr.mxu0 0.0
    %654 = vmatpush1.msra.mxu0 0.0
    %655 = vmatprep.subr.mxu0 0.0
    %656 = vmatpush1.msra.mxu0 0.0
    %657 = vmatprep.subr.mxu0 0.0
    %658 = vmatpush1.msra.mxu0 0.0
    %659 = vmatprep.subr.mxu0 0.0
    %660 = vmatpush1.msra.mxu0 0.0
    %661 = vmatprep.subr.mxu0 0.0
    %662 = vmatpush1.msra.mxu0 0.0
    %663 = vmatprep.subr.mxu0 0.0
    %664 = vmatpush1.msra.mxu0 0.0
    %665 = vmatprep.mubr.f32.mxu0 0.0
    %666 = vmatmul.mubr.f32.gmra.mrb[0].mxu0 %v506
    %v667 = vpop.f32.mrb[0].mxu0
    %v668 = vadd.f32 %v503, %v667
    %v669 = vpop.f32.mrb[0].mxu0
    %670 = vmatprep.mubr.f32.mxu0 0.0
    %671 = vmatmul.mubr.f32.gmra.mrb[0].mxu0 %v509
    %v672 = vpop.f32.mrb[0].mxu0
    %v673 = vadd.f32 %v503, %v672
    %v674 = vpop.f32.mrb[0].mxu0
    %675 = vmatprep.mubr.f32.mxu0 0.0
    %676 = vmatmul.mubr.f32.gmra.mrb[0].mxu0 %v512
    %v677 = vpop.f32.mrb[0].mxu0
    %v678 = vadd.f32 %v503, %v677
    %v679 = vpop.f32.mrb[0].mxu0
    %680 = vmatprep.mubr.f32.mxu0 0.0
    %681 = vmatmul.mubr.f32.gmra.mrb[0].mxu0 %v515
    %v682 = vpop.f32.mrb[0].mxu0
    %v683 = vadd.f32 %v503, %v682
    %v684 = vpop.f32.mrb[0].mxu0
    %685 = vmatprep.mubr.f32.mxu0 0.0
    %686 = vmatmul.mubr.f32.gmra.mrb[0].mxu0 %v518
    %v687 = vpop.f32.mrb[0].mxu0
    %v688 = vadd.f32 %v503, %v687
    %v689 = vpop.f32.mrb[0].mxu0
    %690 = vmatprep.mubr.f32.mxu0 0.0
    %691 = vmatmul.mubr.f32.gmra.mrb[0].mxu0 %v521
    %v692 = vpop.f32.mrb[0].mxu0
    %v693 = vadd.f32 %v503, %v692
    %v694 = vpop.f32.mrb[0].mxu0
    %695 = vmatprep.mubr.f32.mxu0 0.0
    %696 = vmatmul.mubr.f32.gmra.mrb[0].mxu0 %v524
    %v697 = vpop.f32.mrb[0].mxu0
    %v698 = vadd.f32 %v503, %v697
    %v699 = vpop.f32.mrb[0].mxu0
    %700 = vmatprep.mubr.f32.mxu0 0.0
    %701 = vmatmul.mubr.f32.gmra.mrb[0].mxu0 %v527
    %v702 = vpop.f32.mrb[0].mxu0
    %v703 = vadd.f32 %v503, %v702
    %v704 = vpop.f32.mrb[0].mxu0
    %705 = vmatprep.mubr.f32.mxu0 0.0
    %706 = vmatmul.mubr.f32.gmra.mrb[0].mxu0 %v530
    %v707 = vpop.f32.mrb[0].mxu0
    %v708 = vadd.f32 %v503, %v707
    %v709 = vpop.f32.mrb[0].mxu0
    %710 = vmatprep.mubr.f32.mxu0 0.0
    %711 = vmatmul.mubr.f32.gmra.mrb[0].mxu0 %v533
    %v712 = vpop.f32.mrb[0].mxu0
    %v713 = vadd.f32 %v503, %v712
    %v714 = vpop.f32.mrb[0].mxu0
    %715 = vmatprep.mubr.f32.mxu0 0.0
    %716 = vmatmul.mubr.f32.gmra.mrb[0].mxu0 %v536
    %v717 = vpop.f32.mrb[0].mxu0
    %v718 = vadd.f32 %v503, %v717
    %v719 = vpop.f32.mrb[0].mxu0
    %720 = vmatprep.mubr.f32.mxu0 0.0
    %721 = vmatmul.mubr.f32.gmra.mrb[0].mxu0 %v539
    %v722 = vpop.f32.mrb[0].mxu0
    %v723 = vadd.f32 %v503, %v722
    %v724 = vpop.f32.mrb[0].mxu0
    %725 = vmatprep.mubr.f32.mxu0 0.0
    %726 = vmatmul.mubr.f32.gmra.mrb[0].mxu0 %v542
    %v727 = vpop.f32.mrb[0].mxu0
    %v728 = vadd.f32 %v503, %v727
    %v729 = vpop.f32.mrb[0].mxu0
    %730 = vmatprep.mubr.f32.mxu0 0.0
    %731 = vmatmul.mubr.f32.gmra.mrb[0].mxu0 %v545
    %v732 = vpop.f32.mrb[0].mxu0
    %v733 = vadd.f32 %v503, %v732
    %v734 = vpop.f32.mrb[0].mxu0
    %735 = vmatprep.mubr.f32.mxu0 0.0
    %736 = vmatmul.mubr.f32.gmra.mrb[0].mxu0 %v548
    %v737 = vpop.f32.mrb[0].mxu0
    %v738 = vadd.f32 %v503, %v737
    %v739 = vpop.f32.mrb[0].mxu0
    %740 = vmatprep.mubr.f32.mxu0 0.0
    %741 = vmatmul.mubr.f32.gmra.mrb[0].mxu0 %v551
    %v742 = vpop.f32.mrb[0].mxu0
    %v743 = vadd.f32 %v503, %v742
    %v744 = vpop.f32.mrb[0].mxu0
    %745 = vmatprep.mubr.f32.mxu0 0.0
    %746 = vmatmul.mubr.f32.gmra.mrb[0].mxu0 %v554
    %v747 = vpop.f32.mrb[0].mxu0
    %v748 = vadd.f32 %v503, %v747
    %v749 = vpop.f32.mrb[0].mxu0
    %750 = vmatprep.mubr.f32.mxu0 0.0
    %751 = vmatmul.mubr.f32.gmra.mrb[0].mxu0 %v557
    %v752 = vpop.f32.mrb[0].mxu0
    %v753 = vadd.f32 %v503, %v752
    %v754 = vpop.f32.mrb[0].mxu0
    %755 = vmatprep.mubr.f32.mxu0 0.0
    %756 = vmatmul.mubr.f32.gmra.mrb[0].mxu0 %v560
    %v757 = vpop.f32.mrb[0].mxu0
    %v758 = vadd.f32 %v503, %v757
    %v759 = vpop.f32.mrb[0].mxu0
    %760 = vmatprep.mubr.f32.mxu0 0.0
    %761 = vmatmul.mubr.f32.gmra.mrb[0].mxu0 %v563
    %v762 = vpop.f32.mrb[0].mxu0
    %v763 = vadd.f32 %v503, %v762
    %v764 = vpop.f32.mrb[0].mxu0
    %765 = vmatprep.mubr.f32.mxu0 0.0
    %766 = vmatmul.mubr.f32.gmra.mrb[0].mxu0 %v566
    %v767 = vpop.f32.mrb[0].mxu0
    %v768 = vadd.f32 %v503, %v767
    %v769 = vpop.f32.mrb[0].mxu0
    %770 = vmatprep.mubr.f32.mxu0 0.0
    %771 = vmatmul.mubr.f32.gmra.mrb[0].mxu0 %v569
    %v772 = vpop.f32.mrb[0].mxu0
    %v773 = vadd.f32 %v503, %v772
    %v774 = vpop.f32.mrb[0].mxu0
    %775 = vmatprep.mubr.f32.mxu0 0.0
    %776 = vmatmul.mubr.f32.gmra.mrb[0].mxu0 %v572
    %v777 = vpop.f32.mrb[0].mxu0
    %v778 = vadd.f32 %v503, %v777
    %v779 = vpop.f32.mrb[0].mxu0
    %780 = vmatprep.mubr.f32.mxu0 0.0
    %781 = vmatmul.mubr.f32.gmra.mrb[0].mxu0 %v575
    %v782 = vpop.f32.mrb[0].mxu0
    %v783 = vadd.f32 %v503, %v782
    %v784 = vpop.f32.mrb[0].mxu0
    %785 = vmatprep.mubr.f32.mxu0 0.0
    %786 = vmatmul.mubr.f32.gmra.mrb[0].mxu0 %v578
    %v787 = vpop.f32.mrb[0].mxu0
    %v788 = vadd.f32 %v503, %v787
    %v789 = vpop.f32.mrb[0].mxu0
    %790 = vmatprep.mubr.f32.mxu0 0.0
    %791 = vmatmul.mubr.f32.gmra.mrb[0].mxu0 %v581
    %v792 = vpop.f32.mrb[0].mxu0
    %v793 = vadd.f32 %v503, %v792
    %v794 = vpop.f32.mrb[0].mxu0
    %795 = vmatprep.mubr.f32.mxu0 0.0
    %796 = vmatmul.mubr.f32.gmra.mrb[0].mxu0 %v584
    %v797 = vpop.f32.mrb[0].mxu0
    %v798 = vadd.f32 %v503, %v797
    %v799 = vpop.f32.mrb[0].mxu0
    %800 = vmatprep.mubr.f32.mxu0 0.0
    %801 = vmatmul.mubr.f32.gmra.mrb[0].mxu0 %v587
    %v802 = vpop.f32.mrb[0].mxu0
    %v803 = vadd.f32 %v503, %v802
    %v804 = vpop.f32.mrb[0].mxu0
    %805 = vmatprep.mubr.f32.mxu0 0.0
    %806 = vmatmul.mubr.f32.gmra.mrb[0].mxu0 %v590
    %v807 = vpop.f32.mrb[0].mxu0
    %v808 = vadd.f32 %v503, %v807
    %v809 = vpop.f32.mrb[0].mxu0
    %810 = vmatprep.mubr.f32.mxu0 0.0
    %811 = vmatmul.mubr.f32.gmra.mrb[0].mxu0 %v593
    %v812 = vpop.f32.mrb[0].mxu0
    %v813 = vadd.f32 %v503, %v812
    %v814 = vpop.f32.mrb[0].mxu0
    %815 = vmatprep.mubr.f32.mxu0 0.0
    %816 = vmatmul.mubr.f32.gmra.mrb[0].mxu0 %v596
    %v817 = vpop.f32.mrb[0].mxu0
    %v818 = vadd.f32 %v503, %v817
    %v819 = vpop.f32.mrb[0].mxu0
    %820 = vmatprep.mubr.f32.mxu0 0.0
    %821 = vmatmul.mubr.f32.gmra.mrb[0].mxu0 %v599
    %v822 = vpop.f32.mrb[0].mxu0
    %v823 = vadd.f32 %v503, %v822
    %v824 = vpop.f32.mrb[0].mxu0
    %825 = vdwg.mxu0
    %v826 = vmax.f32 %v668, 0.0
    %v827 = vmax.f32 %v673, 0.0
    %v828 = vmax.f32 %v678, 0.0
    %v829 = vmax.f32 %v683, 0.0
    %v830 = vmax.f32 %v688, 0.0
    %v831 = vmax.f32 %v693, 0.0
    %v832 = vmax.f32 %v698, 0.0
    %v833 = vmax.f32 %v703, 0.0
    %v834 = vmax.f32 %v708, 0.0
    %v835 = vmax.f32 %v713, 0.0
    %v836 = vmax.f32 %v718, 0.0
    %v837 = vmax.f32 %v723, 0.0
    %v838 = vmax.f32 %v728, 0.0
    %v839 = vmax.f32 %v733, 0.0
    %v840 = vmax.f32 %v738, 0.0
    %v841 = vmax.f32 %v743, 0.0
    %v842 = vmax.f32 %v748, 0.0
    %v843 = vmax.f32 %v753, 0.0
    %v844 = vmax.f32 %v758, 0.0
    %v845 = vmax.f32 %v763, 0.0
    %v846 = vmax.f32 %v768, 0.0
    %v847 = vmax.f32 %v773, 0.0
    %v848 = vmax.f32 %v778, 0.0
    %v849 = vmax.f32 %v783, 0.0
    %v850 = vmax.f32 %v788, 0.0
    %v851 = vmax.f32 %v793, 0.0
    %v852 = vmax.f32 %v798, 0.0
    %v853 = vmax.f32 %v803, 0.0
    %v854 = vmax.f32 %v808, 0.0
    %v855 = vmax.f32 %v813, 0.0
    %v856 = vmax.f32 %v818, 0.0
    %v857 = vmax.f32 %v823, 0.0
    %v858 = vld [vmem:[%s6] sm:$0xff]
    %v859 = vld [vmem:[%s6 + $0x8] sm:$0xff]
    %v860 = vld [vmem:[%s6 + $0x10] sm:$0xff]
    %v861 = vld [vmem:[%s6 + $0x18] sm:$0xff]
    %863 = vset.pattern.permute.xlu0 0
    %864 = vperm.xlu0 %863, %v34
    %v865 = vpop.permute.xlu0 %864
    %v867 = vlaneseq
    %v868 = vshrl.u32 %v867, 7
    %v869 = vsub.s32 0, %v868
    %v870 = vrot.slane %v865, %v869
    %871 = vxpose.xlu0.b32.start [1/16] %v858, 128
    %872 = vxpose.xlu0.b32.cont [2/16] %v859, 128
    %873 = vxpose.xlu0.b32.cont [3/16] %v860, 128
    %874 = vxpose.xlu0.b32.cont [4/16] %v861, 128
    %875 = vxpose.xlu0.b32.cont [5/16] 0.0, 128
    %876 = vxpose.xlu0.b32.cont [6/16] 0.0, 128
    %877 = vxpose.xlu0.b32.cont [7/16] 0.0, 128
    %878 = vxpose.xlu0.b32.cont [8/16] 0.0, 128
    %879 = vxpose.xlu0.b32.cont [9/16] 0.0, 128
    %880 = vxpose.xlu0.b32.cont [10/16] 0.0, 128
    %881 = vxpose.xlu0.b32.cont [11/16] 0.0, 128
    %882 = vxpose.xlu0.b32.cont [12/16] 0.0, 128
    %883 = vxpose.xlu0.b32.cont [13/16] 0.0, 128
    %884 = vxpose.xlu0.b32.cont [14/16] 0.0, 128
    %885 = vxpose.xlu0.b32.cont [15/16] 0.0, 128
    %886 = vxpose.xlu0.b32.end [16/16] 0.0, 128
    %v887 = vpop.trf.xlu0
    %v888 = vpop.trf.xlu0
    %v889 = vpop.trf.xlu0
    %v890 = vpop.trf.xlu0
    %v891 = vpop.trf.xlu0
    %v892 = vpop.trf.xlu0
    %v893 = vpop.trf.xlu0
    %v894 = vpop.trf.xlu0
    %v895 = vpop.trf.xlu0
    %v896 = vpop.trf.xlu0
    %v897 = vpop.trf.xlu0
    %v898 = vpop.trf.xlu0
    %v899 = vpop.trf.xlu0
    %v900 = vpop.trf.xlu0
    %v901 = vpop.trf.xlu0
    %v902 = vpop.trf.xlu0
    %v904 = vsel %vm141, %v887, 0
    %v907 = vsel %vm141, %v826, 0
    %v910 = vsel %vm141, %v827, 0
    %v913 = vsel %vm141, %v828, 0
    %v916 = vsel %vm141, %v829, 0
    %v919 = vsel %vm141, %v830, 0
    %v922 = vsel %vm141, %v831, 0
    %v925 = vsel %vm141, %v832, 0
    %v928 = vsel %vm141, %v833, 0
    %v931 = vsel %vm141, %v834, 0
    %v934 = vsel %vm141, %v835, 0
    %v937 = vsel %vm141, %v836, 0
    %v940 = vsel %vm141, %v837, 0
    %v943 = vsel %vm141, %v838, 0
    %v946 = vsel %vm141, %v839, 0
    %v949 = vsel %vm141, %v840, 0
    %v952 = vsel %vm141, %v841, 0
    %v955 = vsel %vm141, %v842, 0
    %v958 = vsel %vm141, %v843, 0
    %v961 = vsel %vm141, %v844, 0
    %v964 = vsel %vm141, %v845, 0
    %v967 = vsel %vm141, %v846, 0
    %v970 = vsel %vm141, %v847, 0
    %v973 = vsel %vm141, %v848, 0
    %v976 = vsel %vm141, %v849, 0
    %v979 = vsel %vm141, %v850, 0
    %v982 = vsel %vm141, %v851, 0
    %v985 = vsel %vm141, %v852, 0
    %v988 = vsel %vm141, %v853, 0
    %v991 = vsel %vm141, %v854, 0
    %v994 = vsel %vm141, %v855, 0
    %v997 = vsel %vm141, %v856, 0
    %v1000 = vsel %vm141, %v857, 0
    %1002 = vmatprep.subr.mxu0 0.0
    %1003 = vmatpush1.xpose.msra.mxu0 %v907
    %1004 = vmatprep.subr.mxu0 0.0
    %1005 = vmatpush1.xpose.msra.mxu0 %v910
    %1006 = vmatprep.subr.mxu0 0.0
    %1007 = vmatpush1.xpose.msra.mxu0 %v913
    %1008 = vmatprep.subr.mxu0 0.0
    %1009 = vmatpush1.xpose.msra.mxu0 %v916
    %1010 = vmatprep.subr.mxu0 0.0
    %1011 = vmatpush1.xpose.msra.mxu0 %v919
    %1012 = vmatprep.subr.mxu0 0.0
    %1013 = vmatpush1.xpose.msra.mxu0 %v922
    %1014 = vmatprep.subr.mxu0 0.0
    %1015 = vmatpush1.xpose.msra.mxu0 %v925
    %1016 = vmatprep.subr.mxu0 0.0
    %1017 = vmatpush1.xpose.msra.mxu0 %v928
    %1018 = vmatprep.subr.mxu0 0.0
    %1019 = vmatpush1.xpose.msra.mxu0 %v931
    %1020 = vmatprep.subr.mxu0 0.0
    %1021 = vmatpush1.xpose.msra.mxu0 %v934
    %1022 = vmatprep.subr.mxu0 0.0
    %1023 = vmatpush1.xpose.msra.mxu0 %v937
    %1024 = vmatprep.subr.mxu0 0.0
    %1025 = vmatpush1.xpose.msra.mxu0 %v940
    %1026 = vmatprep.subr.mxu0 0.0
    %1027 = vmatpush1.xpose.msra.mxu0 %v943
    %1028 = vmatprep.subr.mxu0 0.0
    %1029 = vmatpush1.xpose.msra.mxu0 %v946
    %1030 = vmatprep.subr.mxu0 0.0
    %1031 = vmatpush1.xpose.msra.mxu0 %v949
    %1032 = vmatprep.subr.mxu0 0.0
    %1033 = vmatpush1.xpose.msra.mxu0 %v952
    %1034 = vmatprep.subr.mxu0 0.0
    %1035 = vmatpush1.xpose.msra.mxu0 %v955
    %1036 = vmatprep.subr.mxu0 0.0
    %1037 = vmatpush1.xpose.msra.mxu0 %v958
    %1038 = vmatprep.subr.mxu0 0.0
    %1039 = vmatpush1.xpose.msra.mxu0 %v961
    %1040 = vmatprep.subr.mxu0 0.0
    %1041 = vmatpush1.xpose.msra.mxu0 %v964
    %1042 = vmatprep.subr.mxu0 0.0
    %1043 = vmatpush1.xpose.msra.mxu0 %v967
    %1044 = vmatprep.subr.mxu0 0.0
    %1045 = vmatpush1.xpose.msra.mxu0 %v970
    %1046 = vmatprep.subr.mxu0 0.0
    %1047 = vmatpush1.xpose.msra.mxu0 %v973
    %1048 = vmatprep.subr.mxu0 0.0
    %1049 = vmatpush1.xpose.msra.mxu0 %v976
    %1050 = vmatprep.subr.mxu0 0.0
    %1051 = vmatpush1.xpose.msra.mxu0 %v979
    %1052 = vmatprep.subr.mxu0 0.0
    %1053 = vmatpush1.xpose.msra.mxu0 %v982
    %1054 = vmatprep.subr.mxu0 0.0
    %1055 = vmatpush1.xpose.msra.mxu0 %v985
    %1056 = vmatprep.subr.mxu0 0.0
    %1057 = vmatpush1.xpose.msra.mxu0 %v988
    %1058 = vmatprep.subr.mxu0 0.0
    %1059 = vmatpush1.xpose.msra.mxu0 %v991
    %1060 = vmatprep.subr.mxu0 0.0
    %1061 = vmatpush1.xpose.msra.mxu0 %v994
    %1062 = vmatprep.subr.mxu0 0.0
    %1063 = vmatpush1.xpose.msra.mxu0 %v997
    %1064 = vmatprep.subr.mxu0 0.0
    %1065 = vmatpush1.xpose.msra.mxu0 %v1000
    %1066 = vmatprep.mubr.f32.mxu0 0.0
    %1067 = vmatmul.mubr.f32.gmra.mrb[0].mxu0 %v904
    %v1068 = vpop.f32.mrb[0].mxu0
    %v1069 = vadd.f32 %v870, %v1068
    %v1070 = vpop.f32.mrb[0].mxu0
    %v1071 = vadd.f32 %v870, %v1070
    %1072 = vdwg.mxu0
    %v1073 = vxor.u32 %v1069, 2147483648
    %v1074 = vxor.u32 %v1071, 2147483648
    %v1075 = vmul.f32 %v1073, 1.442695
    %v1076 = vpow.pop %v1075
    %v1077 = vmul.f32 %v1074, 1.442695
    %v1078 = vpow.pop %v1077
    %v1079 = vadd.f32 %v1076, 1.0
    %v1080 = vadd.f32 %v1078, 1.0
    %v1081 = vrcp.pop %v1079
    %v1082 = vmul.f32 1.0, %v1081
    %v1083 = vrcp.pop %v1080
    %v1084 = vmul.f32 1.0, %v1083
    %v1087 = vcombine.low %v1082, %v1084
    %v1089 = vunpack.c.l.s4 1966171168
    %v1090 = vunpack.c.0.s8 %v1089
    %v1091 = vlaneseq
    %v1092 = vshrl.u32 %v1091, 7
    %v1093 = vsub.s32 %v1090, %v1092
    %v1094 = vrot.slane %v1087, %v1093
    %v1096 = vunpack.c.l.s4 1966171168
    %v1097 = vunpack.c.0.s8 %v1096
    %v1098 = vlaneseq
    %v1099 = vshrl.u32 %v1098, 7
    %v1100 = vsub.s32 %v1097, %v1099
    %v1101 = vrot.slane %v1094, %v1100
    %v1103 = vlaneseq
    %vm1104 = vcmp.ge.s32.totalorder %v1103, 0
    %vm1105 = vcmp.lt.s32.totalorder %v1103, 256
    %vm1106 = vmand %vm1104, %vm1105
    %1107 = vst.msk [vmem:[#allocation3] sm:$0x3] %vm1106, %v1101
    // Predicated region
    $region34: #{tpu_custom_call.1} parent=1 // pred_check
      _
    $region35: #{tpu_custom_call.1} parent=1 // pred_check_branch
      %1109 = sbr.rel (0) target = $region37
    $region36: #{tpu_custom_call.1} parent=1 // pred_region
      %s1111 = ssub.s32 32, 32
      %1112 = vsyncadd [#allocation4], %s1111
      %s1114 = sshll.u32 [#allocation3], 4
      %s1115 = int_to_ptr.vmem [resolvable:$true] %s1114
      %1117 = dma.vmem_to_hbm [thread:$0]  %s1115, 32, %s8, [#allocation4]
    $region37: #{tpu_custom_call.1} parent=1 // pred_fallthru
      _
    // Predicated region
    $region38: #{tpu_custom_call.1} parent=1 // pred_check
      _
    $region39: #{tpu_custom_call.1} parent=1 // pred_check_branch
      %1119 = sbr.rel (0) target = $region41
    $region40: #{tpu_custom_call.1} parent=1 // pred_region
      %1120 = dma.done [#allocation4], 32
    $region41: #{tpu_custom_call.1} parent=1 // pred_fallthru
      _
    %1121 = vsyncpa [#allocation4], 1

</llo_original>
